<compile_context>
chip_gen: v5e
topology: v5e:2x2
jax: 0.10.0
libtpu: 0.0.40
codegen_flags: <defaults>
</compile_context>

<pallas_src>
import functools

import jax
import jax.numpy as jnp
from jax import lax
from jax.experimental import pallas as pl
from jax.experimental.pallas import tpu as pltpu

_LANES = 128          # lanes per vreg row
_BOXES_PER_ROW = 32   # 128 lanes / 4 coords per box
_MAX_TM = 2048        # rows per grid step: 2048*128*4 B = 1 MiB per input block


# --------------------------------------------------------------------------
# Kernel bodies
# --------------------------------------------------------------------------
def _iou_loss_lanes(p, t, eps):
    """Per-lane -log(IoU) on interleaved (rows, 128) tiles.

    Lanes 4b..4b+3 of a row hold (x1, y1, x2, y2) of one box; the result is
    valid at lanes l with l % 4 == 0 (other lanes hold don't-care values).
    """
    pr = pltpu.roll(p, _LANES - 2, axis=1)   # lane l <- lane (l + 2) % 128
    tr = pltpu.roll(t, _LANES - 2, axis=1)
    mx = jnp.maximum(p, t)                   # lanes 0/1 (mod 4): max x1 / max y1
    mn = jnp.minimum(pr, tr)                 # lanes 0/1 (mod 4): min x2 / min y2
    wh = jnp.maximum(mn - mx, 0.0)           # lanes 0/1 (mod 4): w / h of overlap
    dp = pr - p                              # lanes 0/1 (mod 4): pred  w / h
    dt = tr - t                              # lanes 0/1 (mod 4): gt    w / h
    overlap = wh * pltpu.roll(wh, _LANES - 1, axis=1)   # lane 0 (mod 4): w*h
    area_p = dp * pltpu.roll(dp, _LANES - 1, axis=1)
    area_t = dt * pltpu.roll(dt, _LANES - 1, axis=1)
    union = jnp.maximum(area_p + area_t - overlap, eps)  # bbox_overlaps eps guard
    ious = jnp.maximum(overlap / union, eps)              # .clamp(min=eps)
    return -jnp.log(ious)                                 # -ious.log()


def _iou_sum_kernel(pred_ref, target_ref, psum_ref, *, eps, n_boxes):
    """Fused masked partial-sum of the per-box loss (mean/sum reductions)."""
    loss = _iou_loss_lanes(pred_ref[...], target_ref[...], eps)
    tm = loss.shape[0]
    rows = lax.broadcasted_iota(jnp.int32, loss.shape, 0) + pl.program_id(0) * tm
    lanes = lax.broadcasted_iota(jnp.int32, loss.shape, 1)
    box_idx = rows * _BOXES_PER_ROW + (lanes >> 2)
    # keep only lane 0 of each 4-lane box group, and only real (unpadded) boxes
    valid = ((lanes & 3) == 0) & (box_idx < n_boxes)
    part = jnp.sum(jnp.where(valid, loss, 0.0), axis=0, keepdims=True)     # (1,128)
    sub = lax.broadcasted_iota(jnp.int32, psum_ref.shape, 0)
    psum_ref[...] = jnp.where(sub == 0, part, 0.0)   # (8,128) lane-dense store


def _iou_dense_kernel(pred_ref, target_ref, loss_ref, *, eps):
    """Dense interleaved per-box loss (reduction='none' / weighted paths)."""
    loss_ref[...] = _iou_loss_lanes(pred_ref[...], target_ref[...], eps)


# --------------------------------------------------------------------------
# Wrappers
# --------------------------------------------------------------------------
def _to_rows(boxes, n):
    """(N,4) -> (ceil(N/32), 128) interleaved rows. Free reshape when N % 32 == 0."""
    boxes = boxes.astype(jnp.float32)
    n32 = -(-n // _BOXES_PER_ROW) * _BOXES_PER_ROW
    if n32 != n:
        # TODO(synk): this pad is a whole-array copy; callers that supply
        # N % 32 == 0 (or an already (nrows,128)-contiguous buffer) skip it.
        boxes = jnp.pad(boxes, ((0, n32 - n), (0, 0)))
    return boxes.reshape(n32 // _BOXES_PER_ROW, _LANES)


def _tiling(nrows):
    """Rows per grid step (multiple of 8, <= _MAX_TM) and grid size."""
    target = pl.cdiv(nrows, _MAX_TM)
    if nrows >= 16:
        target = max(target, 2)   # >=2 steps so v7x megacore shards the axis
    tm = max(8, ((pl.cdiv(nrows, target) + 7) // 8) * 8)
    return pl.cdiv(nrows, tm), tm


def _iou_loss_sum(pred, target, eps=1e-6):
    """sum_i -log(IoU_i) over real boxes, fused in a single Pallas kernel."""
    n = pred.shape[0]
    p = _to_rows(pred, n)
    t = _to_rows(target, n)
    nrows = p.shape[0]
    num_tiles, tm = _tiling(nrows)
    kernel = functools.partial(_iou_sum_kernel, eps=eps, n_boxes=n)
    psums = pl.pallas_call(
        kernel,
        out_shape=jax.ShapeDtypeStruct((num_tiles * 8, _LANES), jnp.float32),
        grid=(num_tiles,),
        in_specs=[pl.BlockSpec((tm, _LANES), lambda i: (i, 0)),
                  pl.BlockSpec((tm, _LANES), lambda i: (i, 0))],
        out_specs=pl.BlockSpec((8, _LANES), lambda i: (i, 0)),
        compiler_params=pltpu.CompilerParams(
            dimension_semantics=("parallel",)),
        cost_estimate=pl.CostEstimate(
            flops=30 * n,
            transcendentals=2 * n,
            bytes_accessed=2 * nrows * _LANES * 4 + num_tiles * 8 * _LANES * 4),
    )(p, t)
    return jnp.sum(psums)


def _iou_loss_elementwise(pred, target, eps=1e-6):
    """Per-box IoU loss (N,) via the dense interleaved kernel."""
    n = pred.shape[0]
    p = _to_rows(pred, n)
    t = _to_rows(target, n)
    nrows = p.shape[0]
    num_tiles, tm = _tiling(nrows)
    kernel = functools.partial(_iou_dense_kernel, eps=eps)
    out = pl.pallas_call(
        kernel,
        out_shape=jax.ShapeDtypeStruct((nrows, _LANES), jnp.float32),
        grid=(num_tiles,),
        in_specs=[pl.BlockSpec((tm, _LANES), lambda i: (i, 0)),
                  pl.BlockSpec((tm, _LANES), lambda i: (i, 0))],
        out_specs=pl.BlockSpec((tm, _LANES), lambda i: (i, 0)),
        compiler_params=pltpu.CompilerParams(
            dimension_semantics=("parallel",)),
        cost_estimate=pl.CostEstimate(
            flops=30 * n,
            transcendentals=2 * n,
            bytes_accessed=3 * nrows * _LANES * 4),
    )(p, t)
    # loss of box b sits at interleaved flat lane 4*b
    return out.reshape(-1, 4)[:n, 0]


class IoULoss:
    """JAX/Pallas re-implementation of mmdet's IoULoss forward pass."""

    def __init__(self, eps=1e-6, reduction='mean', loss_weight=1.0):
        self.eps = eps
        self.reduction = reduction
        self.loss_weight = loss_weight

    def __call__(self, pred, target, weight=None, avg_factor=None,
                 reduction_override=None):
        assert reduction_override in (None, 'none', 'mean', 'sum')
        reduction = reduction_override if reduction_override else self.reduction
        n = pred.shape[0]

        # Fast fused path: unweighted mean / sum (tiny partial-sum output).
        if weight is None and reduction in ('mean', 'sum'):
            total = _iou_loss_sum(pred, target, eps=self.eps)
            if reduction == 'mean':
                denom = avg_factor if avg_factor is not None else n
                out = total / denom
            else:  # 'sum'
                if avg_factor is not None:
                    raise ValueError(
                        'avg_factor can not be used with reduction="sum"')
                out = total
            return self.loss_weight * out

        # Dense path: reduction='none' and / or weighted loss.
        loss = _iou_loss_elementwise(pred, target, eps=self.eps)   # (N,)
        if weight is not None:
            loss = loss * weight
        if avg_factor is None:
            if reduction == 'mean':
                out = loss.mean()
            elif reduction == 'sum':
                out = loss.sum()
            else:
                out = loss
        else:
            if reduction == 'mean':
                out = loss.sum() / avg_factor
            elif reduction == 'none':
                out = loss
            else:
                raise ValueError(
                    'avg_factor can not be used with reduction="sum"')
        out = self.loss_weight * out

        # PyTorch fast path `if not torch.any(weight > 0): return (pred*weight).sum()`
        # as a device-side select (jit-safe, no host sync) for scalar reductions.
        if weight is not None and reduction in ('mean', 'sum'):
            w = jnp.asarray(weight)
            wb = w if w.ndim == pred.ndim else w[..., None]
            fallback = (pred * wb).sum()
            out = jnp.where(jnp.any(w > 0), out, fallback)
        # TODO(synk): for reduction='none' with an all-nonpositive weight, PyTorch
        # returns a scalar (pred*weight).sum(); we keep the elementwise result to
        # stay shape-stable under jit.
        return out


if __name__ == "__main__":
    key = jax.random.PRNGKey(0)

    def make_boxes(k, n):
        k1, k2 = jax.random.split(k)
        xy = jax.random.uniform(k1, (n, 2), jnp.float32, 0.0, 32.0)
        wh = jax.random.uniform(k2, (n, 2), jnp.float32, 1.0, 16.0)
        return jnp.concatenate([xy, xy + wh], axis=1)  # valid (x1,y1,x2,y2)

    def ref_loss(pred, target, eps=1e-6):
        lt = jnp.maximum(pred[:, :2], target[:, :2])
        rb = jnp.minimum(pred[:, 2:], target[:, 2:])
        wh = jnp.maximum(rb - lt, 0.0)
        overlap = wh[:, 0] * wh[:, 1]
        ap = (pred[:, 2] - pred[:, 0]) * (pred[:, 3] - pred[:, 1])
        at = (target[:, 2] - target[:, 0]) * (target[:, 3] - target[:, 1])
        union = jnp.maximum(ap + at - overlap, eps)
        ious = jnp.maximum(overlap / union, eps)
        return -jnp.log(ious)

    loss_fn = IoULoss(eps=1e-6, reduction='mean', loss_weight=1.0)

    ok = True
    # 8: single tiny tile; 200: lane/row padding tail; 1000: >=2 grid tiles.
    for n in (8, 200, 1000):
        kp, kt, kw, key = jax.random.split(key, 4)
        pred = make_boxes(kp, n)
        target = make_boxes(kt, n)
        ref = ref_loss(pred, target)

        out_mean = loss_fn(pred, target)                       # fused sum kernel
        jax.block_until_ready(out_mean)
        ok &= bool(jnp.allclose(out_mean, ref.mean(), rtol=1e-5, atol=1e-5))

        out_sum = loss_fn(pred, target, reduction_override='sum')
        jax.block_until_ready(out_sum)
        ok &= bool(jnp.allclose(out_sum, ref.sum(), rtol=1e-5, atol=1e-4))

        out_none = loss_fn(pred, target, reduction_override='none')
        jax.block_until_ready(out_none)
        ok &= bool(jnp.allclose(out_none, ref, rtol=1e-5, atol=1e-5))

        w = jax.random.uniform(kw, (n,), jnp.float32)
        out_w = loss_fn(pred, target, weight=w)                # dense + weighted path
        jax.block_until_ready(out_w)
        ok &= bool(jnp.allclose(out_w, (ref * w).mean(), rtol=1e-5, atol=1e-5))

    assert ok, "Pallas IoULoss mismatch vs pure-JAX reference"
    print("KERNEL_OK")
</pallas_src>

<mosaic_0001>
module attributes {stable_mosaic.version = 11 : i64} {
  func.func @_iou_sum_kernel(%arg0: i32, %arg1: memref<8x128xf32, #tpu.memory_space<vmem>>, %arg2: memref<8x128xf32, #tpu.memory_space<vmem>>, %arg3: memref<8x128xf32, #tpu.memory_space<vmem>>) attributes {dimension_semantics = [#tpu.dimension_semantics<parallel>], iteration_bounds = array<i64: 1>, scalar_prefetch = 0 : i64, scratch_operands = 0 : i64, tpu.core_type = #tpu.core_type<tc>, window_params = [{transform_indices = @transform_0, window_bounds = array<i64: 8, 128>}, {transform_indices = @transform_1, window_bounds = array<i64: 8, 128>}, {transform_indices = @transform_2, window_bounds = array<i64: 8, 128>}]} {
    %c0 = arith.constant 0 : index
    %c0_0 = arith.constant 0 : index
    %0 = vector.load %arg1[%c0, %c0_0] : memref<8x128xf32, #tpu.memory_space<vmem>>, vector<8x128xf32>
    %c0_1 = arith.constant 0 : index
    %c0_2 = arith.constant 0 : index
    %1 = vector.load %arg2[%c0_1, %c0_2] : memref<8x128xf32, #tpu.memory_space<vmem>>, vector<8x128xf32>
    %c126_i32 = arith.constant 126 : i32
    %2 = tpu.dynamic_rotate %0 by %c126_i32 dim 1 : vector<8x128xf32>, i32 -> vector<8x128xf32>
    %c126_i32_3 = arith.constant 126 : i32
    %3 = tpu.dynamic_rotate %1 by %c126_i32_3 dim 1 : vector<8x128xf32>, i32 -> vector<8x128xf32>
    %4 = arith.maximumf %0, %1 : vector<8x128xf32>
    %5 = arith.minimumf %2, %3 : vector<8x128xf32>
    %6 = arith.subf %5, %4 : vector<8x128xf32>
    %cst = arith.constant 0.000000e+00 : f32
    %7 = vector.broadcast %cst : f32 to vector<8x128xf32>
    %8 = arith.maximumf %6, %7 : vector<8x128xf32>
    %9 = arith.subf %2, %0 : vector<8x128xf32>
    %10 = arith.subf %3, %1 : vector<8x128xf32>
    %c127_i32 = arith.constant 127 : i32
    %11 = tpu.dynamic_rotate %8 by %c127_i32 dim 1 : vector<8x128xf32>, i32 -> vector<8x128xf32>
    %12 = arith.mulf %8, %11 : vector<8x128xf32>
    %c127_i32_4 = arith.constant 127 : i32
    %13 = tpu.dynamic_rotate %9 by %c127_i32_4 dim 1 : vector<8x128xf32>, i32 -> vector<8x128xf32>
    %14 = arith.mulf %9, %13 : vector<8x128xf32>
    %c127_i32_5 = arith.constant 127 : i32
    %15 = tpu.dynamic_rotate %10 by %c127_i32_5 dim 1 : vector<8x128xf32>, i32 -> vector<8x128xf32>
    %16 = arith.mulf %10, %15 : vector<8x128xf32>
    %17 = arith.addf %14, %16 : vector<8x128xf32>
    %18 = arith.subf %17, %12 : vector<8x128xf32>
    %cst_6 = arith.constant 9.99999997E-7 : f32
    %19 = vector.broadcast %cst_6 : f32 to vector<8x128xf32>
    %20 = arith.maximumf %18, %19 : vector<8x128xf32>
    %21 = arith.divf %12, %20 : vector<8x128xf32>
    %cst_7 = arith.constant 9.99999997E-7 : f32
    %22 = vector.broadcast %cst_7 : f32 to vector<8x128xf32>
    %23 = arith.maximumf %21, %22 : vector<8x128xf32>
    %24 = math.log %23 : vector<8x128xf32>
    %cst_8 = arith.constant 0.000000e+00 : f32
    %25 = vector.broadcast %cst_8 : f32 to vector<8x128xf32>
    %26 = arith.subf %25, %24 : vector<8x128xf32>
    %27 = tpu.iota {dimensions = array<i32: 0>} : vector<8x128xi32>
    %c8_i32 = arith.constant 8 : i32
    %28 = arith.muli %arg0, %c8_i32 : i32
    %29 = vector.broadcast %28 : i32 to vector<8x128xi32>
    %30 = arith.addi %27, %29 : vector<8x128xi32>
    %31 = tpu.iota {dimensions = array<i32: 1>} : vector<8x128xi32>
    %c32_i32 = arith.constant 32 : i32
    %32 = vector.broadcast %c32_i32 : i32 to vector<8x128xi32>
    %33 = arith.muli %30, %32 : vector<8x128xi32>
    %c2_i32 = arith.constant 2 : i32
    %34 = vector.broadcast %c2_i32 : i32 to vector<8x128xi32>
    %35 = arith.shrsi %31, %34 : vector<8x128xi32>
    %36 = arith.addi %33, %35 : vector<8x128xi32>
    %c3_i32 = arith.constant 3 : i32
    %37 = vector.broadcast %c3_i32 : i32 to vector<8x128xi32>
    %38 = arith.andi %31, %37 : vector<8x128xi32>
    %c0_i32 = arith.constant 0 : i32
    %39 = vector.broadcast %c0_i32 : i32 to vector<8x128xi32>
    %40 = arith.cmpi eq, %38, %39 : vector<8x128xi32>
    %c8_i32_9 = arith.constant 8 : i32
    %41 = vector.broadcast %c8_i32_9 : i32 to vector<8x128xi32>
    %42 = arith.cmpi slt, %36, %41 : vector<8x128xi32>
    %43 = arith.andi %40, %42 : vector<8x128xi1>
    %cst_10 = arith.constant 0.000000e+00 : f32
    %44 = vector.broadcast %cst_10 : f32 to vector<8x128xf32>
    %45 = arith.select %43, %26, %44 : vector<8x128xi1>, vector<8x128xf32>
    %cst_11 = arith.constant dense<0.000000e+00> : vector<128xf32>
    %46 = vector.multi_reduction <add>, %45, %cst_11 [0] : vector<8x128xf32> to vector<128xf32>
    %47 = vector.shape_cast %46 : vector<128xf32> to vector<1x128xf32>
    %48 = tpu.iota {dimensions = array<i32: 0>} : vector<8x128xi32>
    %c0_i32_12 = arith.constant 0 : i32
    %49 = vector.broadcast %c0_i32_12 : i32 to vector<8x128xi32>
    %50 = arith.cmpi eq, %48, %49 : vector<8x128xi32>
    %cst_13 = arith.constant 0.000000e+00 : f32
    %51 = vector.shape_cast %47 : vector<1x128xf32> to vector<1x128xf32>
    %52 = vector.broadcast %51 : vector<1x128xf32> to vector<8x128xf32>
    %53 = vector.broadcast %cst_13 : f32 to vector<8x128xf32>
    %54 = arith.select %50, %52, %53 : vector<8x128xi1>, vector<8x128xf32>
    %c0_14 = arith.constant 0 : index
    %c0_15 = arith.constant 0 : index
    %55 = vector.load %arg3[%c0_14, %c0_15] : memref<8x128xf32, #tpu.memory_space<vmem>>, vector<8x128xf32>
    tpu.vector_store %arg3[%c0_14, %c0_15], %54 {strides = array<i32>} : memref<8x128xf32, #tpu.memory_space<vmem>>, vector<8x128xf32>,
    return
  }
  func.func @transform_0(%arg0: i32) -> (i32, i32) {
    %c0_i32 = arith.constant 0 : i32
    %c0_i32_0 = arith.constant 0 : i32
    return %arg0, %c0_i32 : i32, i32
  }
  func.func @transform_1(%arg0: i32) -> (i32, i32) {
    %c0_i32 = arith.constant 0 : i32
    %c0_i32_0 = arith.constant 0 : i32
    return %arg0, %c0_i32 : i32, i32
  }
  func.func @transform_2(%arg0: i32) -> (i32, i32) {
    %c0_i32 = arith.constant 0 : i32
    %c0_i32_0 = arith.constant 0 : i32
    return %arg0, %c0_i32 : i32, i32
  }
}

</mosaic_0001>

<llo_original>
// kernel: tpu_custom_call.1
$region0: #{tpu_custom_call.1}
  #allocation0 [shape = 'u32[]', space=smem, size = 0x4, offset = 0x4, fixed_abs, tag = 'smem constant byte address 0x4 - core index']
  #allocation1 [shape = 'u32[72,128]{1,0:T(1,128)}', space=vmem, size = 0x9000, scoped, tag = 'internal scratch']
  %s0 = inlined_call_operand.hbm [shape: f32[1,128], index: 0, kind: input, shape index: {}]
  %s1 = inlined_call_operand.hbm [shape: f32[1,128], index: 1, kind: input, shape index: {}]
  %s2 = inlined_call_operand.hbm [shape: f32[8,128], index: 2, kind: output, shape index: {}]
  %s3 = sld [smem:[#allocation0]]
  $region26: #{tpu_custom_call.1} parent=0
    _
  %s5 = ssub.s32 1, %s3
  %s6 = scalar_select 0, %s5, %s3
  $region1: #{tpu_custom_call.1} parent=0
    #allocation2 [shape = 'u8[4096]{0}', space=vmem, size = 0x1000, scoped, tag = 'input window, operand 0, single buffered']
    #allocation3 [shape = 's32[1]{0}', space=sflag, size = 0x4, scoped, tag = 'scoped memory for tpu_custom_call.1']
    #allocation4 [shape = 's32[1]{0}', space=sflag, size = 0x4, scoped, tag = 'scoped memory for tpu_custom_call.1']
    #allocation5 [shape = 'u8[4096]{0}', space=vmem, size = 0x1000, scoped, tag = 'input window, operand 1, single buffered']
    #allocation6 [shape = 's32[1]{0}', space=sflag, size = 0x4, scoped, tag = 'scoped memory for tpu_custom_call.1']
    #allocation7 [shape = 'u8[4096]{0}', space=vmem, size = 0x1000, scoped, tag = 'output window, operand 0, single buffered']
    %7 = vsyncpa [#allocation3], 0
    %8 = vsyncpa [#allocation6], 0
    %9 = vsyncpa [#allocation4], 0
    // Predicated region
    $region2: #{tpu_custom_call.1} parent=1 // pred_check
      _
    $region3: #{tpu_custom_call.1} parent=1 // pred_check_branch
      %11 = sbr.rel (0) target = $region5
    $region4: #{tpu_custom_call.1} parent=1 // pred_region
      %13 = vsyncadd [#allocation3], 112
      %s14 = sshll.u32 %s0, 4
      %s15 = int_to_ptr.hbm [resolvable:$true] %s14
      %s16 = sshll.u32 [#allocation2], 4
      %s17 = int_to_ptr.vmem [resolvable:$true] %s16
      %22 = dma.hbm_to_vmem [thread:$0]  %s15, 16, %s17, [#allocation3], 16, 16, 1
    $region5: #{tpu_custom_call.1} parent=1 // pred_fallthru
      _
    // Predicated region
    $region6: #{tpu_custom_call.1} parent=1 // pred_check
      _
    $region7: #{tpu_custom_call.1} parent=1 // pred_check_branch
      %24 = sbr.rel (0) target = $region9
    $region8: #{tpu_custom_call.1} parent=1 // pred_region
      %26 = vsyncadd [#allocation6], 112
      %s27 = sshll.u32 %s1, 4
      %s28 = int_to_ptr.hbm [resolvable:$true] %s27
      %s29 = sshll.u32 [#allocation5], 4
      %s30 = int_to_ptr.vmem [resolvable:$true] %s29
      %35 = dma.hbm_to_vmem [thread:$0]  %s28, 16, %s30, [#allocation6], 16, 16, 1
    $region9: #{tpu_custom_call.1} parent=1 // pred_fallthru
      _
    // Predicated region
    $region10: #{tpu_custom_call.1} parent=1 // pred_check
      _
    $region11: #{tpu_custom_call.1} parent=1 // pred_check_branch
      %37 = sbr.rel (0) target = $region13
    $region12: #{tpu_custom_call.1} parent=1 // pred_region
      %39 = dma.done [#allocation3], 128
    $region13: #{tpu_custom_call.1} parent=1 // pred_fallthru
      _
    // Predicated region
    $region14: #{tpu_custom_call.1} parent=1 // pred_check
      _
    $region15: #{tpu_custom_call.1} parent=1 // pred_check_branch
      %41 = sbr.rel (0) target = $region17
    $region16: #{tpu_custom_call.1} parent=1 // pred_region
      %43 = dma.done [#allocation6], 128
    $region17: #{tpu_custom_call.1} parent=1 // pred_fallthru
      _
    %v44 = vld [vmem:[#allocation2] sm:$0xff]
    %v45 = vld [vmem:[#allocation5] sm:$0xff]
    %46 = vrot.lane.b32.xlu0 %v44, 126
    %v47 = vpop.permute.xlu0 %46
    %48 = vrot.lane.b32.xlu0 %v45, 126
    %v49 = vpop.permute.xlu0 %48
    %v50 = vmax.f32 %v44, %v45
    %v51 = vmin.f32 %v47, %v49
    %v52 = vsub.f32 %v51, %v50
    %v53 = vmax.f32 %v52, 0.0
    %v54 = vsub.f32 %v47, %v44
    %v55 = vsub.f32 %v49, %v45
    %56 = vrot.lane.b32.xlu0 %v53, 127
    %v57 = vpop.permute.xlu0 %56
    %v58 = vmul.f32 %v53, %v57
    %59 = vrot.lane.b32.xlu0 %v54, 127
    %v60 = vpop.permute.xlu0 %59
    %v61 = vmul.f32 %v54, %v60
    %62 = vrot.lane.b32.xlu0 %v55, 127
    %v63 = vpop.permute.xlu0 %62
    %v64 = vmul.f32 %v55, %v63
    %v65 = vadd.f32 %v61, %v64
    %v66 = vsub.f32 %v65, %v58
    %v67 = vmax.f32 %v66, 1e-06
    %v68 = vrcp.pop %v67
    %v69 = vmul.f32 %v67, %v68
    %v70 = vsub.f32 1.0, %v69
    %v71 = vmul.f32 %v68, %v70
    %v72 = vadd.f32 %v68, %v71
    %vm73 = vweird.f32 %v67
    %vm74 = vweird.f32 %v68
    %vm75 = vmor %vm73, %vm74
    %v76 = vsel %vm75, %v68, %v72
    %v77 = vand.u32 2147483647, %v67
    %vm78 = vcmp.eq.f32.partialorder %v77, 8.507059e+37
    %v79 = vand.u32 %v67, 2147483648
    %v80 = vor.u32 1.1754944e-38, %v79
    %v81 = vsel %vm78, %v80, %v76
    %v82 = vmul.f32 %v58, %v81
    %v83 = vmax.f32 %v82, 1e-06
    %v84 = vlog2.pop %v83
    %v85 = vmul.f32 %v84, 0.6931472
    %v86 = vsub.f32 0.0, %v85
    %v87 = vlaneseq
    %v88 = vshrl.u32 %v87, 7
    %s89 = smul.u32 0, 8
    %v90 = vstv %s89
    %v91 = vadd.s32 %v88, %v90
    %v92 = vlaneseq
    %v93 = vand.u32 %v92, 127
    %v94 = vmul.u32 %v91, 32
    %v95 = vshra.s32 %v93, 2
    %v96 = vadd.s32 %v94, %v95
    %v97 = vand.u32 %v93, 3
    %vm98 = vcmp.eq.s32.totalorder %v97, 0
    %vm99 = vcmp.lt.s32.totalorder %v96, 8
    %vm100 = vmand %vm98, %vm99
    %v101 = vsel %vm100, %v86, 0.0
    %v102 = vrot.slane %v101, 4
    %v103 = vadd.f32 %v101, %v102
    %v104 = vrot.slane %v103, 2
    %v105 = vadd.f32 %v103, %v104
    %v106 = vrot.slane %v105, 1
    %v107 = vadd.f32 %v105, %v106
    %vm108 = vcmp.eq.s32.totalorder %v88, 0
    %v109 = vsel %vm108, %v107, 0.0
    %110 = vst [vmem:[#allocation7] sm:$0xff] %v109
    // Predicated region
    $region18: #{tpu_custom_call.1} parent=1 // pred_check
      _
    $region19: #{tpu_custom_call.1} parent=1 // pred_check_branch
      %112 = sbr.rel (0) target = $region21
    $region20: #{tpu_custom_call.1} parent=1 // pred_region
      %114 = vsyncadd [#allocation4], 0
      %s116 = sshll.u32 [#allocation7], 4
      %s117 = int_to_ptr.vmem [resolvable:$true] %s116
      %s118 = sshll.u32 %s2, 4
      %s119 = int_to_ptr.hbm [resolvable:$true] %s118
      %121 = dma.vmem_to_hbm [thread:$0]  %s117, 128, %s119, [#allocation4]
    $region21: #{tpu_custom_call.1} parent=1 // pred_fallthru
      _
    // Predicated region
    $region22: #{tpu_custom_call.1} parent=1 // pred_check
      _
    $region23: #{tpu_custom_call.1} parent=1 // pred_check_branch
      %123 = sbr.rel (0) target = $region25
    $region24: #{tpu_custom_call.1} parent=1 // pred_region
      %125 = dma.done [#allocation4], 128
    $region25: #{tpu_custom_call.1} parent=1 // pred_fallthru
      _
    %126 = vsyncpa [#allocation3], 1
    %127 = vsyncpa [#allocation6], 1
    %128 = vsyncpa [#allocation4], 1

</llo_original>
